<compile_context>
chip_gen: v5e
topology: v5e:2x2
jax: 0.10.0
libtpu: 0.0.40
codegen_flags: <defaults>
</compile_context>

<pallas_src>
import functools

import jax
import jax.numpy as jnp
from jax.experimental import pallas as pl
from jax.experimental.pallas import tpu as pltpu


def _cdiv(a, b):
    return -(-a // b)


def _round_up(a, b):
    return _cdiv(a, b) * b


def _highpass_kernel(x_ref, o_ref, *, inv_w_hpf, width):
    # Block is (CT, R, L): CT fused (batch*channel) planes, each plane stored
    # row-major-folded as R rows of L = k*width lanes (lane-dense for W<128).
    x = x_ref[...].astype(jnp.float32)
    _, R, L = x.shape

    ridx = jax.lax.broadcasted_iota(jnp.int32, (1, R, 1), 1)   # folded row
    cidx = jax.lax.broadcasted_iota(jnp.int32, (1, 1, L), 2)   # folded column
    widx = cidx % width          # column within the original W-wide image row

    def roll(a, shift, axis):
        s = shift % a.shape[axis]
        return a if s == 0 else pltpu.roll(a, shift=s, axis=axis)

    # ---- vertical neighbours: flat plane index p -> p -/+ width ------------
    x_prev = roll(x, 1, 1)        # folded row r-1 (wrap at r=0 masked below)
    x_next = roll(x, R - 1, 1)    # folded row r+1 (wrap at r=R-1 masked below)
    s = width % L
    if s == 0:                    # plane not folded along lanes (k == 1)
        up, dn = x_prev, x_next
    else:
        # Lanes that wrap around the folded row take data from the previous /
        # next folded row; the rest stay in the same folded row.
        up = roll(jnp.where(cidx >= L - s, x_prev, x), s, 2)
        dn = roll(jnp.where(cidx < s, x_next, x), L - s, 2)
    up_ok = (ridx > 0) | (cidx >= width)            # original row h-1 exists
    dn_ok = (ridx < R - 1) | (cidx < L - width)     # original row h+1 exists
    rows = x + jnp.where(up_ok, up, 0.0) + jnp.where(dn_ok, dn, 0.0)

    # ---- horizontal neighbours: p -/+ 1, masked at w == 0 / w == W-1 -------
    left = jnp.where(widx > 0, roll(rows, 1, 2), 0.0)
    right = jnp.where(widx < width - 1, roll(rows, L - 1, 2), 0.0)
    box = rows + left + right

    # depthwise 3x3 Laplacian: (8*x - 8 neighbours)/w_hpf == (9*x - box)/w_hpf
    o_ref[...] = ((9.0 * x - box) * inv_w_hpf).astype(o_ref.dtype)


def _pick_fold(h, w):
    """Fold factor k (k | h): plane (h, w) is viewed as (h//k, k*w).

    Prefer a trailing (lane) dim that is a multiple of 128 (unmasked stores),
    then at least 128 wide, then a row count that is sublane-friendly
    (multiple of 8, or exactly 1 so no sublane rolls are needed), then small k.
    """
    best_k, best_score = 1, None
    for k in range(1, h + 1):
        if h % k:
            continue
        L, r = k * w, h // k
        score = (L % 128 == 0, L >= 128, (r % 8 == 0) or (r == 1), -k)
        if best_score is None or score > best_score:
            best_k, best_score = k, score
    return best_k


def _pick_ct(bc, r, l, itemsize, vmem_budget_bytes):
    """Planes per block, sized from (8,128)-padded bytes incl. f32 temps."""
    lp = _round_up(l, 128)
    rp_io = _round_up(r, max(8, 32 // itemsize))   # sublane multiple of I/O dtype
    rp_f32 = _round_up(r, 8)
    # Double-buffered input + output blocks (I/O dtype) plus ~4 block-sized
    # f32 temporaries live inside the kernel body.
    per_plane = 4 * rp_io * lp * itemsize + 4 * rp_f32 * lp * 4
    ct = max(1, min(bc, vmem_budget_bytes // per_plane))
    # Keep >= ~8 grid steps when bc allows: amortizes the ~0.35us/step grid
    # overhead, keeps the pipeline overlapped, and gives v7x's two TensorCores
    # balanced work.
    ct = max(1, min(ct, bc // min(bc, 8)))
    # Prefer an even number of grid steps (dual-TC balance on v7x).
    steps = _cdiv(bc, ct)
    if bc > 1 and steps % 2:
        for s in range(steps + 1, min(steps + 4, bc) + 1):
            ct2 = max(1, _cdiv(bc, s))
            if _cdiv(bc, ct2) % 2 == 0:
                ct = ct2
                break
    return ct


def highpass(x, w_hpf=1.0):
    """x: (B, C, H, W) -> (B, C, H, W), depthwise 3x3 Laplacian / w_hpf."""
    B, C, H, W = x.shape
    bc = B * C

    k = _pick_fold(H, W)
    R, L = H // k, k * W
    xf = x.reshape(bc, R, L)          # free row-major reshape (no copy)

    itemsize = jnp.dtype(x.dtype).itemsize
    try:
        vmem_cap = int(pltpu.get_tpu_info().vmem_capacity_bytes)
    except Exception:  # conservative fallback (v7x-like 64 MiB)
        vmem_cap = 64 << 20
    vmem_limit = max(16 << 20, min(64 << 20, vmem_cap // 2))
    ct = _pick_ct(bc, R, L, itemsize, (vmem_limit * 3) // 4)
    steps = _cdiv(bc, ct)             # partial last block is fine (masked)

    kernel = functools.partial(
        _highpass_kernel, inv_w_hpf=1.0 / float(w_hpf), width=W)

    # TODO(synk): verify in xprof that the "parallel" axis actually shards
    # across v7x's two TensorCores; if not, switch to an explicit
    # CORE_PARALLEL leading axis / pl.core_map over a tensorcore mesh.
    out = pl.pallas_call(
        kernel,
        out_shape=jax.ShapeDtypeStruct((bc, R, L), x.dtype),
        grid=(steps,),
        in_specs=[pl.BlockSpec((ct, R, L), lambda i: (i, 0, 0))],
        out_specs=pl.BlockSpec((ct, R, L), lambda i: (i, 0, 0)),
        compiler_params=pltpu.CompilerParams(
            dimension_semantics=("parallel",),
            vmem_limit_bytes=vmem_limit),
        cost_estimate=pl.CostEstimate(
            flops=13 * bc * H * W,
            bytes_accessed=2 * bc * H * W * itemsize,
            transcendentals=0),
    )(xf)
    return out.reshape(B, C, H, W)


def highpass_ref(x, w_hpf=1.0):
    """Plain-JAX reference: depthwise conv identical to F.conv2d(..., groups=C)."""
    C = x.shape[1]
    filt = jnp.array([[-1.0, -1.0, -1.0],
                      [-1.0, 8.0, -1.0],
                      [-1.0, -1.0, -1.0]], jnp.float32) / w_hpf
    w = jnp.tile(filt[None, None], (C, 1, 1, 1))  # (C, 1, 3, 3) OIHW
    return jax.lax.conv_general_dilated(
        x, w, window_strides=(1, 1), padding=((1, 1), (1, 1)),
        dimension_numbers=("NCHW", "OIHW", "NCHW"),
        feature_group_count=C)


if __name__ == "__main__":
    key = jax.random.PRNGKey(0)
    B, C, H, W = 2, 4, 16, 16
    w_hpf = 1.0  # matches HighPass(w_hpf=1, device)

    x = jax.random.normal(key, (B, C, H, W), dtype=jnp.float32)

    out = highpass(x, w_hpf)
    out = jax.block_until_ready(out)

    ref = highpass_ref(x, w_hpf)
    assert out.shape == (B, C, H, W)
    assert jnp.allclose(out, ref, atol=1e-4, rtol=1e-4), \
        f"max err {jnp.max(jnp.abs(out - ref))}"

    print("KERNEL_OK")
</pallas_src>

<mosaic_0001>
module attributes {stable_mosaic.version = 11 : i64} {
  func.func @_highpass_kernel(%arg0: i32, %arg1: memref<1x1x256xf32, #tpu.memory_space<vmem>>, %arg2: memref<1x1x256xf32, #tpu.memory_space<vmem>>) attributes {dimension_semantics = [#tpu.dimension_semantics<parallel>], iteration_bounds = array<i64: 8>, scalar_prefetch = 0 : i64, scratch_operands = 0 : i64, tpu.core_type = #tpu.core_type<tc>, window_params = [{transform_indices = @transform_0, window_bounds = array<i64: 1, 1, 256>}, {transform_indices = @transform_1, window_bounds = array<i64: 1, 1, 256>}]} {
    %c0 = arith.constant 0 : index
    %c0_0 = arith.constant 0 : index
    %c0_1 = arith.constant 0 : index
    %0 = vector.load %arg1[%c0, %c0_0, %c0_1] : memref<1x1x256xf32, #tpu.memory_space<vmem>>, vector<1x1x256xf32>
    %1 = tpu.iota {dimensions = array<i32: 1>} : vector<1x1x1xi32>
    %2 = tpu.iota {dimensions = array<i32: 2>} : vector<1x1x256xi32>
    %c16_i32 = arith.constant 16 : i32
    %c0_i32 = arith.constant 0 : i32
    %3 = arith.cmpi eq, %c16_i32, %c0_i32 : i32
    %c1_i32 = arith.constant 1 : i32
    %4 = arith.select %3, %c1_i32, %c16_i32 : i32
    %5 = vector.broadcast %4 : i32 to vector<1x1x256xi32>
    %6 = arith.remsi %2, %5 : vector<1x1x256xi32>
    %c0_i32_2 = arith.constant 0 : i32
    %7 = vector.broadcast %c0_i32_2 : i32 to vector<1x1x256xi32>
    %8 = arith.cmpi ne, %6, %7 : vector<1x1x256xi32>
    %c0_i32_3 = arith.constant 0 : i32
    %9 = vector.broadcast %c0_i32_3 : i32 to vector<1x1x256xi32>
    %10 = arith.cmpi slt, %6, %9 : vector<1x1x256xi32>
    %c0_i32_4 = arith.constant 0 : i32
    %11 = arith.cmpi slt, %4, %c0_i32_4 : i32
    %12 = vector.broadcast %11 : i1 to vector<1x1x256xi1>
    %13 = vector.broadcast %12 : vector<1x1x256xi1> to vector<1x1x256xi1>
    %14 = arith.xori %10, %13 : vector<1x1x256xi1>
    %15 = arith.andi %14, %8 : vector<1x1x256xi1>
    %16 = vector.broadcast %4 : i32 to vector<1x1x256xi32>
    %17 = arith.addi %6, %16 : vector<1x1x256xi32>
    %18 = arith.select %15, %17, %6 : vector<1x1x256xi1>, vector<1x1x256xi32>
    %c240_i32 = arith.constant 240 : i32
    %19 = vector.broadcast %c240_i32 : i32 to vector<1x1x256xi32>
    %20 = arith.cmpi sge, %2, %19 : vector<1x1x256xi32>
    %21 = arith.select %20, %0, %0 : vector<1x1x256xi1>, vector<1x1x256xf32>
    %c16_i32_5 = arith.constant 16 : i32
    %22 = tpu.dynamic_rotate %21 by %c16_i32_5 dim 2 : vector<1x1x256xf32>, i32 -> vector<1x1x256xf32>
    %c16_i32_6 = arith.constant 16 : i32
    %23 = vector.broadcast %c16_i32_6 : i32 to vector<1x1x256xi32>
    %24 = arith.cmpi slt, %2, %23 : vector<1x1x256xi32>
    %25 = arith.select %24, %0, %0 : vector<1x1x256xi1>, vector<1x1x256xf32>
    %c240_i32_7 = arith.constant 240 : i32
    %26 = tpu.dynamic_rotate %25 by %c240_i32_7 dim 2 : vector<1x1x256xf32>, i32 -> vector<1x1x256xf32>
    %c0_i32_8 = arith.constant 0 : i32
    %27 = vector.broadcast %c0_i32_8 : i32 to vector<1x1x1xi32>
    %28 = arith.cmpi sgt, %1, %27 : vector<1x1x1xi32>
    %c16_i32_9 = arith.constant 16 : i32
    %29 = vector.broadcast %c16_i32_9 : i32 to vector<1x1x256xi32>
    %30 = arith.cmpi sge, %2, %29 : vector<1x1x256xi32>
    %31 = vector.broadcast %28 : vector<1x1x1xi1> to vector<1x1x256xi1>
    %32 = arith.ori %31, %30 : vector<1x1x256xi1>
    %c0_i32_10 = arith.constant 0 : i32
    %33 = vector.broadcast %c0_i32_10 : i32 to vector<1x1x1xi32>
    %34 = arith.cmpi slt, %1, %33 : vector<1x1x1xi32>
    %c240_i32_11 = arith.constant 240 : i32
    %35 = vector.broadcast %c240_i32_11 : i32 to vector<1x1x256xi32>
    %36 = arith.cmpi slt, %2, %35 : vector<1x1x256xi32>
    %37 = vector.broadcast %34 : vector<1x1x1xi1> to vector<1x1x256xi1>
    %38 = arith.ori %37, %36 : vector<1x1x256xi1>
    %cst = arith.constant 0.000000e+00 : f32
    %39 = vector.broadcast %cst : f32 to vector<1x1x256xf32>
    %40 = arith.select %32, %22, %39 : vector<1x1x256xi1>, vector<1x1x256xf32>
    %41 = arith.addf %0, %40 : vector<1x1x256xf32>
    %cst_12 = arith.constant 0.000000e+00 : f32
    %42 = vector.broadcast %cst_12 : f32 to vector<1x1x256xf32>
    %43 = arith.select %38, %26, %42 : vector<1x1x256xi1>, vector<1x1x256xf32>
    %44 = arith.addf %41, %43 : vector<1x1x256xf32>
    %c0_i32_13 = arith.constant 0 : i32
    %45 = vector.broadcast %c0_i32_13 : i32 to vector<1x1x256xi32>
    %46 = arith.cmpi sgt, %18, %45 : vector<1x1x256xi32>
    %c1_i32_14 = arith.constant 1 : i32
    %47 = tpu.dynamic_rotate %44 by %c1_i32_14 dim 2 : vector<1x1x256xf32>, i32 -> vector<1x1x256xf32>
    %cst_15 = arith.constant 0.000000e+00 : f32
    %48 = vector.broadcast %cst_15 : f32 to vector<1x1x256xf32>
    %49 = arith.select %46, %47, %48 : vector<1x1x256xi1>, vector<1x1x256xf32>
    %c15_i32 = arith.constant 15 : i32
    %50 = vector.broadcast %c15_i32 : i32 to vector<1x1x256xi32>
    %51 = arith.cmpi slt, %18, %50 : vector<1x1x256xi32>
    %c255_i32 = arith.constant 255 : i32
    %52 = tpu.dynamic_rotate %44 by %c255_i32 dim 2 : vector<1x1x256xf32>, i32 -> vector<1x1x256xf32>
    %cst_16 = arith.constant 0.000000e+00 : f32
    %53 = vector.broadcast %cst_16 : f32 to vector<1x1x256xf32>
    %54 = arith.select %51, %52, %53 : vector<1x1x256xi1>, vector<1x1x256xf32>
    %55 = arith.addf %44, %49 : vector<1x1x256xf32>
    %56 = arith.addf %55, %54 : vector<1x1x256xf32>
    %cst_17 = arith.constant 9.000000e+00 : f32
    %57 = vector.broadcast %cst_17 : f32 to vector<1x1x256xf32>
    %58 = arith.mulf %57, %0 : vector<1x1x256xf32>
    %59 = arith.subf %58, %56 : vector<1x1x256xf32>
    %cst_18 = arith.constant 1.000000e+00 : f32
    %60 = vector.broadcast %cst_18 : f32 to vector<1x1x256xf32>
    %61 = arith.mulf %59, %60 : vector<1x1x256xf32>
    %c0_19 = arith.constant 0 : index
    %c0_20 = arith.constant 0 : index
    %c0_21 = arith.constant 0 : index
    %62 = vector.load %arg2[%c0_19, %c0_20, %c0_21] : memref<1x1x256xf32, #tpu.memory_space<vmem>>, vector<1x1x256xf32>
    tpu.vector_store %arg2[%c0_19, %c0_20, %c0_21], %61 {strides = array<i32>} : memref<1x1x256xf32, #tpu.memory_space<vmem>>, vector<1x1x256xf32>,
    return
  }
  func.func @transform_0(%arg0: i32) -> (i32, i32, i32) {
    %c0_i32 = arith.constant 0 : i32
    %c0_i32_0 = arith.constant 0 : i32
    %c0_i32_1 = arith.constant 0 : i32
    return %arg0, %c0_i32, %c0_i32_0 : i32, i32, i32
  }
  func.func @transform_1(%arg0: i32) -> (i32, i32, i32) {
    %c0_i32 = arith.constant 0 : i32
    %c0_i32_0 = arith.constant 0 : i32
    %c0_i32_1 = arith.constant 0 : i32
    return %arg0, %c0_i32, %c0_i32_0 : i32, i32, i32
  }
}

</mosaic_0001>

<llo_original>
// kernel: tpu_custom_call.1
$region0: #{tpu_custom_call.1}
  #allocation0 [shape = 'u32[]', space=smem, size = 0x4, offset = 0x4, fixed_abs, tag = 'smem constant byte address 0x4 - core index']
  #allocation1 [shape = 'u32[72,128]{1,0:T(1,128)}', space=vmem, size = 0x9000, scoped, tag = 'internal scratch']
  %s0 = inlined_call_operand.hbm [shape: f32[8,1,256], index: 0, kind: input, shape index: {}]
  %s1 = inlined_call_operand.hbm [shape: f32[8,1,256], index: 1, kind: output, shape index: {}]
  %s2 = sld [smem:[#allocation0]]
  $region41: #{tpu_custom_call.1} parent=0
    _
  %s4 = ssub.s32 1, %s2
  %s5 = scalar_select 0, %s4, %s2
  $region1: #{tpu_custom_call.1} parent=0
    #allocation2 [shape = 'u8[2048]{0}', space=vmem, size = 0x800, scoped, tag = 'input window, operand 0']
    #allocation3 [shape = 's32[2]{0}', space=sflag, size = 0x8, scoped, tag = 'scoped memory for tpu_custom_call.1']
    #allocation4 [shape = 's32[2]{0}', space=sflag, size = 0x8, scoped, tag = 'scoped memory for tpu_custom_call.1']
    #allocation5 [shape = 'u8[2048]{0}', space=vmem, size = 0x800, scoped, tag = 'output window, operand 0']
    %6 = vsyncpa [#allocation3], 0
    %s7 = scalar_lea.sflag [#allocation3], 1
    %8 = vsyncpa %s7, 0
    %9 = vsyncpa [#allocation4], 0
    %s10 = scalar_lea.sflag [#allocation4], 1
    %11 = vsyncpa %s10, 0
    loop: start=0, step=1, limit=10
    $region2: #{tpu_custom_call.1} parent=1 // loop_pre_header
      _
    $region3: #{tpu_custom_call.1} parent=1 // loop_header
      %s13 = sphi 0, %s17
      %p14 = scmp.ge.s32.totalorder %s13, 10
      %s23 = sphi 0, %s25
      %s26 = sphi 0, %s23
      %s27 = sphi 0, %s26
      %s43 = sphi 0, %s27
      %s49 = sphi 0, %s51
      %s52 = sphi 0, %s49
      %s53 = sphi 0, %s52
      %s69 = sphi 0, %s53
    $region4: #{tpu_custom_call.1} parent=1 // loop_header_branch
      %16 = sbr.rel (%p14) target = $region8
    $region5: #{tpu_custom_call.1} parent=1 // loop_body
      %s18 = ssub.s32 %s13, 1
      %s19 = ssub.s32 %s13, 2
      %s20 = sadd.s32 %s13, 1
      %s21 = ssub.s32 %s13, %s20
      %p22 = scmp.eq.s32.totalorder %s21, 0
      %s24 = sadd.s32 %s23, 1
      %s25 = scalar_select %p22, %s23, %s24
      %p28 = pneg %p22
      %p29 = scmp.eq.s32.totalorder %s13, 7
      %p30 = por %p28, %p29
      %p31 = scmp.ne.s32.totalorder %s23, %s26
      %p32 = scmp.eq.s32.totalorder %s13, 0
      %p33 = por %p31, %p32
      %p34 = scmp.ne.s32.totalorder %s23, %s26
      %p35 = scmp.eq.s32.totalorder %s18, 7
      %p36 = por %p34, %p35
      %p37 = scmp.ne.s32.totalorder %s26, %s27
      %p38 = scmp.eq.s32.totalorder %s18, 0
      %p39 = por %p37, %p38
      %p40 = scmp.ne.s32.totalorder %s26, %s27
      %p41 = scmp.eq.s32.totalorder %s19, 7
      %p42 = por %p40, %p41
      %p44 = scmp.ne.s32.totalorder %s27, %s43
      %p45 = scmp.eq.s32.totalorder %s19, 0
      %p46 = por %p44, %p45
      %s47 = ssub.s32 %s13, %s20
      %p48 = scmp.eq.s32.totalorder %s47, 0
      %s50 = sadd.s32 %s49, 1
      %s51 = scalar_select %p48, %s49, %s50
      %p54 = pneg %p48
      %p55 = scmp.eq.s32.totalorder %s13, 7
      %p56 = por %p54, %p55
      %p57 = scmp.ne.s32.totalorder %s49, %s52
      %p58 = scmp.eq.s32.totalorder %s13, 0
      %p59 = por %p57, %p58
      %p60 = scmp.ne.s32.totalorder %s49, %s52
      %p61 = scmp.eq.s32.totalorder %s18, 7
      %p62 = por %p60, %p61
      %p63 = scmp.ne.s32.totalorder %s52, %s53
      %p64 = scmp.eq.s32.totalorder %s18, 0
      %p65 = por %p63, %p64
      %p66 = scmp.ne.s32.totalorder %s52, %s53
      %p67 = scmp.eq.s32.totalorder %s19, 7
      %p68 = por %p66, %p67
      %p70 = scmp.ne.s32.totalorder %s53, %s69
      %p71 = scmp.eq.s32.totalorder %s19, 0
      %p72 = por %p70, %p71
      %p73 = scmp.le.s32.totalorder 1, %s13
      %p74 = scmp.lt.s32.totalorder %s13, 9
      %p75 = pnand %p73, %p74
      %p76 = pneg %p75
      // Predicated region
      $region9: #{tpu_custom_call.1} parent=5 // pred_check
        _
      $region10: #{tpu_custom_call.1} parent=5 // pred_check_branch
        %78 = sbr.rel (%p75) target = $region12
      $region11: #{tpu_custom_call.1} parent=5 // pred_region
        %s79 = ssub.s32 %s13, 1
      $region12: #{tpu_custom_call.1} parent=5 // pred_fallthru
        _
      %p80 = scmp.lt.s32.totalorder %s13, 8
      // Predicated region
      $region13: #{tpu_custom_call.1} parent=5 // pred_check
        %p81 = pneg %p80
      $region14: #{tpu_custom_call.1} parent=5 // pred_check_branch
        %83 = sbr.rel (%p81) target = $region16
      $region15: #{tpu_custom_call.1} parent=5 // pred_region
        // Predicated region
        $region17: #{tpu_custom_call.1} parent=15 // pred_check
          %p84 = pneg %p33
        $region18: #{tpu_custom_call.1} parent=15 // pred_check_branch
          %86 = sbr.rel (%p84) target = $region20
        $region19: #{tpu_custom_call.1} parent=15 // pred_region
          %s87 = sand.u32 %s23, 1
          %s88 = scalar_lea.sflag [#allocation3], %s87
          %s89 = sand.u32 %s23, 1
          %s90 = smul.addr %s89, 2
          %s91 = scalar_lea.vmem [#allocation2], %s90
          %93 = vsyncadd %s88, 0
          %s94 = smul.addr %s13, 2
          %s95 = scalar_lea.hbm %s0, %s94
          %s97 = sshll.u32 %s95, 4
          %s98 = int_to_ptr.hbm [resolvable:$true] %s97
          %s99 = sshll.u32 %s91, 4
          %s100 = int_to_ptr.vmem [resolvable:$true] %s99
          %102 = dma.hbm_to_vmem [thread:$0]  %s98, 32, %s100, %s88
        $region20: #{tpu_custom_call.1} parent=15 // pred_fallthru
          _
      $region16: #{tpu_custom_call.1} parent=5 // pred_fallthru
        _
      %p103 = scmp.le.s32.totalorder 1, %s13
      %p104 = scmp.lt.s32.totalorder %s13, 9
      %p105 = pnand %p103, %p104
      %p106 = pneg %p105
      // Predicated region
      $region21: #{tpu_custom_call.1} parent=5 // pred_check
        _
      $region22: #{tpu_custom_call.1} parent=5 // pred_check_branch
        %108 = sbr.rel (%p105) target = $region24
      $region23: #{tpu_custom_call.1} parent=5 // pred_region
        %s109 = ssub.s32 %s13, 1
        %s110 = sand.u32 %s26, 1
        %s111 = scalar_lea.sflag [#allocation3], %s110
        %s112 = sand.u32 %s26, 1
        %s113 = smul.addr %s112, 2
        %s114 = scalar_lea.vmem [#allocation2], %s113
        // Predicated region
        $region25: #{tpu_custom_call.1} parent=23 // pred_check
          %p115 = pneg %p39
        $region26: #{tpu_custom_call.1} parent=23 // pred_check_branch
          %117 = sbr.rel (%p115) target = $region28
        $region27: #{tpu_custom_call.1} parent=23 // pred_region
          %119 = dma.done %s111, 32
        $region28: #{tpu_custom_call.1} parent=23 // pred_fallthru
          _
        %s120 = sand.u32 %s26, 1
        %s121 = scalar_lea.sflag [#allocation3], %s120
        %s122 = sand.u32 %s26, 1
        %s123 = smul.addr %s122, 2
        %s124 = scalar_lea.vmem [#allocation2], %s123
        %p125 = pneg %p39
        %p126 = pneg %p36
        %p127 = pneg %p65
        %p128 = pneg %p62
        %s129 = sand.u32 %s52, 1
        %s130 = scalar_lea.sflag [#allocation4], %s129
        %s131 = sand.u32 %s52, 1
        %s132 = smul.addr %s131, 2
        %s133 = scalar_lea.vmem [#allocation5], %s132
        %v134 = vld [vmem:[%s114] sm:$0x3]
        %v135 = vlaneseq
        %v136 = vshrl.u32 %v135, 7
        %v137 = vlaneseq
        %v138 = vand.u32 %v137, 127
        %v139 = vadd.s32 %v138, 128
        %vm140 = vcmp.lt.s32.totalorder %v138, 0
        %v141 = vsub.s32 0, %v138
        %v142 = vsel %vm140, %v141, %v138
        %v143 = vshrl.u32 %v142, 4
        %v144 = vand.u32 %v142, 15
        %v145 = vsub.s32 0, %v144
        %v146 = vsel %vm140, %v145, %v144
        %vm147 = vcmp.lt.s32.totalorder %v139, 0
        %v148 = vsub.s32 0, %v139
        %v149 = vsel %vm147, %v148, %v139
        %v150 = vshrl.u32 %v149, 4
        %v151 = vand.u32 %v149, 15
        %v152 = vsub.s32 0, %v151
        %v153 = vsel %vm147, %v152, %v151
        %vm154 = vcmp.ne.s32.totalorder %v146, 0
        %vm155 = vcmp.ne.s32.totalorder %v153, 0
        %vm156 = vcmp.lt.s32.totalorder %v146, 0
        %vm157 = vcmp.lt.s32.totalorder %v153, 0
        %vm158 = vmand %vm156, %vm154
        %vm159 = vmand %vm157, %vm155
        %v160 = vadd.s32 %v146, 16
        %v161 = vadd.s32 %v153, 16
        %v162 = vsel %vm158, %v160, %v146
        %v163 = vsel %vm159, %v161, %v153
        %v165 = vperm.slane %v134, 0
        %v166 = vperm.slane %v134, 1
        %169 = vrot.lane.b32.xlu0 %v165, 16
        %v170 = vpop.permute.xlu0 %169
        %171 = vrot.lane.b32.xlu0 %v166, 16
        %v172 = vpop.permute.xlu0 %171
        %vm173 = vcmp.lt.s32.totalorder %v138, 16
        %v174 = vsel %vm173, %v170, %v172
        %v175 = vsel %vm173, %v172, %v170
        %176 = vrot.lane.b32.xlu0 %v165, 112
        %v177 = vpop.permute.xlu0 %176
        %178 = vrot.lane.b32.xlu0 %v166, 112
        %v179 = vpop.permute.xlu0 %178
        %vm180 = vcmp.lt.s32.totalorder %v138, 112
        %v181 = vsel %vm180, %v177, %v179
        %v182 = vsel %vm180, %v179, %v177
        %vm183 = vcmp.gt.s32.totalorder %v136, 0
        %vm184 = vcmp.ge.s32.totalorder %v138, 16
        %vm185 = vcmp.ge.s32.totalorder %v139, 16
        %v186 = vsel %vm183, 1, 0
        %vm187 = vcmp.eq.s32.totalorder %v186, 1
        %vm188 = vmor %vm187, %vm184
        %vm189 = vmor %vm187, %vm185
        %vm190 = vcmp.lt.s32.totalorder %v136, 0
        %vm191 = vcmp.lt.s32.totalorder %v138, 240
        %vm192 = vcmp.lt.s32.totalorder %v139, 240
        %v193 = vsel %vm190, 1, 0
        %vm194 = vcmp.eq.s32.totalorder %v193, 1
        %vm195 = vmor %vm194, %vm191
        %vm196 = vmor %vm194, %vm192
        %v197 = vsel %vm188, %v175, 0.0
        %v198 = vsel %vm189, %v174, 0.0
        %v201 = vrot.slane %v198, 7
        %vm202 = vcmask 1040384
        %v203 = vsel %vm202, %v197, %v201
        %v205 = vadd.f32 %v134, %v203
        %v206 = vsel %vm195, %v181, 0.0
        %v207 = vsel %vm196, %v182, 0.0
        %v210 = vrot.slane %v207, 7
        %v211 = vsel %vm202, %v206, %v210
        %v213 = vadd.f32 %v205, %v211
        %vm214 = vcmp.gt.s32.totalorder %v162, 0
        %vm215 = vcmp.gt.s32.totalorder %v163, 0
        %v217 = vperm.slane %v213, 0
        %v218 = vperm.slane %v213, 1
        %221 = vrot.lane.b32.xlu0 %v217, 1
        %v222 = vpop.permute.xlu0 %221
        %223 = vrot.lane.b32.xlu0 %v218, 1
        %v224 = vpop.permute.xlu0 %223
        %vm225 = vcmp.lt.s32.totalorder %v138, 1
        %v226 = vsel %vm225, %v222, %v224
        %v227 = vsel %vm225, %v224, %v222
        %v228 = vsel %vm214, %v227, 0.0
        %v229 = vsel %vm215, %v226, 0.0
        %vm230 = vcmp.lt.s32.totalorder %v162, 15
        %vm231 = vcmp.lt.s32.totalorder %v163, 15
        %232 = vrot.lane.b32.xlu0 %v217, 127
        %v233 = vpop.permute.xlu0 %232
        %234 = vrot.lane.b32.xlu0 %v218, 127
        %v235 = vpop.permute.xlu0 %234
        %vm236 = vcmp.lt.s32.totalorder %v138, 127
        %v237 = vsel %vm236, %v233, %v235
        %v238 = vsel %vm236, %v235, %v233
        %v239 = vsel %vm230, %v237, 0.0
        %v240 = vsel %vm231, %v238, 0.0
        %v243 = vrot.slane %v229, 7
        %v244 = vsel %vm202, %v228, %v243
        %v246 = vadd.f32 %v213, %v244
        %v249 = vrot.slane %v240, 7
        %v250 = vsel %vm202, %v239, %v249
        %v252 = vadd.f32 %v246, %v250
        %v253 = vmul.f32 %v134, 9.0
        %v254 = vsub.f32 %v253, %v252
        %v255 = vlaneseq
        %vm256 = vcmp.ge.s32.totalorder %v255, 0
        %vm257 = vcmp.lt.s32.totalorder %v255, 256
        %vm258 = vmand %vm256, %vm257
        %259 = vst.msk [vmem:[%s133] sm:$0x3] %vm258, %v254
        %s260 = sand.u32 %s52, 1
        %s261 = scalar_lea.sflag [#allocation4], %s260
        %s262 = sand.u32 %s52, 1
        %s263 = smul.addr %s262, 2
        %s264 = scalar_lea.vmem [#allocation5], %s263
        // Predicated region
        $region29: #{tpu_custom_call.1} parent=23 // pred_check
          %p265 = pneg %p62
        $region30: #{tpu_custom_call.1} parent=23 // pred_check_branch
          %267 = sbr.rel (%p265) target = $region32
        $region31: #{tpu_custom_call.1} parent=23 // pred_region
          %269 = vsyncadd %s261, 0
          %s270 = smul.addr %s18, 2
          %s271 = scalar_lea.hbm %s1, %s270
          %s273 = sshll.u32 %s264, 4
          %s274 = int_to_ptr.vmem [resolvable:$true] %s273
          %s275 = sshll.u32 %s271, 4
          %s276 = int_to_ptr.hbm [resolvable:$true] %s275
          %278 = dma.vmem_to_hbm [thread:$0]  %s274, 32, %s276, %s261
        $region32: #{tpu_custom_call.1} parent=23 // pred_fallthru
          _
      $region24: #{tpu_custom_call.1} parent=5 // pred_fallthru
        _
      %p279 = scmp.le.s32.totalorder 2, %s13
      // Predicated region
      $region33: #{tpu_custom_call.1} parent=5 // pred_check
        %p280 = pneg %p279
      $region34: #{tpu_custom_call.1} parent=5 // pred_check_branch
        %282 = sbr.rel (%p280) target = $region36
      $region35: #{tpu_custom_call.1} parent=5 // pred_region
        %s283 = ssub.s32 %s13, 2
        // Predicated region
        $region37: #{tpu_custom_call.1} parent=35 // pred_check
          %p284 = pneg %p68
        $region38: #{tpu_custom_call.1} parent=35 // pred_check_branch
          %286 = sbr.rel (%p284) target = $region40
        $region39: #{tpu_custom_call.1} parent=35 // pred_region
          %s287 = sand.u32 %s53, 1
          %s288 = scalar_lea.sflag [#allocation4], %s287
          %s289 = sand.u32 %s53, 1
          %s290 = smul.addr %s289, 2
          %s291 = scalar_lea.vmem [#allocation5], %s290
          %293 = dma.done %s288, 32
        $region40: #{tpu_custom_call.1} parent=35 // pred_fallthru
          _
      $region36: #{tpu_custom_call.1} parent=5 // pred_fallthru
        _
    $region6: #{tpu_custom_call.1} parent=1 // loop_footer
      %s17 = sadd.s32 1, %s13
    $region7: #{tpu_custom_call.1} parent=1 // loop_footer_branch
      %12 = sbr.rel target = $region3
    $region8: #{tpu_custom_call.1} parent=1 // loop_exit
      _
    %294 = vsyncpa [#allocation3], 1
    %s295 = scalar_lea.sflag [#allocation3], 1
    %296 = vsyncpa %s295, 1
    %297 = vsyncpa [#allocation4], 1
    %s298 = scalar_lea.sflag [#allocation4], 1
    %299 = vsyncpa %s298, 1

</llo_original>
